<compile_context>
chip_gen: v7x
topology: tpu7x:2x2x1
jax: 0.10.0
libtpu: 0.0.40
codegen_flags: <defaults>
</compile_context>

<pallas_src>
import jax
import jax.numpy as jnp
from jax import lax
from jax.experimental import pallas as pl
from jax.experimental.pallas import tpu as pltpu

EPS = 1e-5  # nn.BatchNorm1d default eps


def _round_up(v, m):
    return (v + m - 1) // m * m


def _choose_tile(dim_pad, cap, unit):
    """Largest multiple of `unit` that divides dim_pad and is <= max(cap, unit)."""
    cap = max(cap, unit)
    best = unit
    t = unit
    while t <= min(cap, dim_pad):
        if dim_pad % t == 0:
            best = t
        t += unit
    return best


# ---------------------------------------------------------------------------
# Kernels
# ---------------------------------------------------------------------------
def _linear_block_single_k_kernel(x_ref, w_ref, scale_ref, shift_ref, o_ref):
    """Whole K fits in one tile: no reduction axis, no scratch accumulator."""
    acc = jnp.dot(x_ref[...], w_ref[...], preferred_element_type=jnp.float32)
    y = acc * scale_ref[...] + shift_ref[...]          # (TM,TN)*(1,TN)+(1,TN)
    o_ref[...] = jnp.maximum(y, 0.0).astype(o_ref.dtype)


def _linear_block_reduce_k_kernel(x_ref, w_ref, scale_ref, shift_ref, o_ref,
                                  acc_ref):
    """K split over grid axis 2 (innermost, "arbitrary")."""
    k = pl.program_id(2)

    @pl.when(k == 0)
    def _():
        acc_ref[...] = jnp.dot(x_ref[...], w_ref[...],
                               preferred_element_type=jnp.float32)

    @pl.when(k > 0)
    def _():
        acc_ref[...] += jnp.dot(x_ref[...], w_ref[...],
                                preferred_element_type=jnp.float32)

    @pl.when(k == pl.num_programs(2) - 1)
    def _():
        y = acc_ref[...] * scale_ref[...] + shift_ref[...]
        o_ref[...] = jnp.maximum(y, 0.0).astype(o_ref.dtype)


# ---------------------------------------------------------------------------
# Parameter preparation (do this ONCE, reuse across forward calls)
# ---------------------------------------------------------------------------
def prepare_linear_block_params(weight, bias, gamma, beta, running_mean,
                                running_var, *, eps=EPS):
    """weight: (out_Chan, in_Chan) PyTorch layout. Returns padded device params."""
    N, K = weight.shape
    K_pad = _round_up(K, 128)
    N_pad = _round_up(N, 128)

    w_t = weight.T.astype(jnp.bfloat16)                       # (K, N), unscaled
    if (K_pad, N_pad) != (K, N):
        w_p = jnp.zeros((K_pad, N_pad), jnp.bfloat16).at[:K, :N].set(w_t)
    else:
        w_p = w_t

    scale = (gamma * lax.rsqrt(running_var + eps)).astype(jnp.float32)   # (N,)
    shift = ((bias - running_mean) * scale + beta).astype(jnp.float32)   # (N,)

    scale_p = jnp.zeros((1, N_pad), jnp.float32).at[0, :N].set(scale)
    shift_p = jnp.zeros((1, N_pad), jnp.float32).at[0, :N].set(shift)

    return {"w": w_p, "scale": scale_p, "shift": shift_p,
            "K": K, "N": N, "K_pad": K_pad, "N_pad": N_pad}


# ---------------------------------------------------------------------------
# Forward
# ---------------------------------------------------------------------------
def linear_block_apply(x, params, *, tm=512, tn=512, tk=1024, max_single_k=2048):
    """x: (B, in_Chan). Returns (B, out_Chan) in x.dtype."""
    M, K = x.shape
    assert K == params["K"], "in_Chan mismatch"
    K_pad, N_pad, N = params["K_pad"], params["N_pad"], params["N"]

    # ---- tile selection ----
    M_pad8 = _round_up(M, 8)
    TM = min(tm, M_pad8)                       # multiple of 8
    M_pad = _round_up(M, TM)

    if K_pad <= max(max_single_k, tk):
        TK = K_pad                             # single K tile -> no reduction axis
    else:
        TK = _choose_tile(K_pad, tk, 128)

    TN = _choose_tile(N_pad, tn, 128)
    # Megacore: if M axis only has 1 program, give the N axis >= 2 programs.
    if M_pad // TM == 1 and N_pad // TN == 1 and N_pad >= 256:
        TN = _choose_tile(N_pad, N_pad // 2, 128)

    nk = K_pad // TK

    # ---- activations: cast to bf16, pad only if needed ----
    x_b = x.astype(jnp.bfloat16)
    if (M_pad, K_pad) != (M, K):
        x_p = jnp.zeros((M_pad, K_pad), jnp.bfloat16).at[:M, :K].set(x_b)
    else:
        x_p = x_b

    out_dtype = x.dtype
    out_bytes = jnp.dtype(out_dtype).itemsize

    # ---- VMEM budget estimate (double-buffered operands + scratch) ----
    vmem_bytes = 2 * (TM * TK * 2 + TK * TN * 2 + 2 * TN * 4 + TM * TN * out_bytes)
    if nk > 1:
        vmem_bytes += TM * TN * 4
    vmem_limit = int(min(max(vmem_bytes + (2 << 20), 32 << 20), 56 << 20))

    if nk == 1:
        grid = (M_pad // TM, N_pad // TN)
        out = pl.pallas_call(
            _linear_block_single_k_kernel,
            out_shape=jax.ShapeDtypeStruct((M_pad, N_pad), out_dtype),
            grid_spec=pltpu.PrefetchScalarGridSpec(
                num_scalar_prefetch=0,
                grid=grid,
                in_specs=[
                    pl.BlockSpec((TM, K_pad), lambda i, j: (i, 0)),   # activations
                    pl.BlockSpec((K_pad, TN), lambda i, j: (0, j)),   # weight (bf16)
                    pl.BlockSpec((1, TN), lambda i, j: (0, j)),       # BN scale
                    pl.BlockSpec((1, TN), lambda i, j: (0, j)),       # folded shift
                ],
                out_specs=pl.BlockSpec((TM, TN), lambda i, j: (i, j)),
            ),
            compiler_params=pltpu.CompilerParams(
                dimension_semantics=("parallel", "parallel"),
                vmem_limit_bytes=vmem_limit,
            ),
        )(x_p, params["w"], params["scale"], params["shift"])
    else:
        grid = (M_pad // TM, N_pad // TN, nk)
        out = pl.pallas_call(
            _linear_block_reduce_k_kernel,
            out_shape=jax.ShapeDtypeStruct((M_pad, N_pad), out_dtype),
            grid_spec=pltpu.PrefetchScalarGridSpec(
                num_scalar_prefetch=0,
                grid=grid,
                in_specs=[
                    pl.BlockSpec((TM, TK), lambda i, j, k: (i, k)),
                    pl.BlockSpec((TK, TN), lambda i, j, k: (k, j)),
                    pl.BlockSpec((1, TN), lambda i, j, k: (0, j)),
                    pl.BlockSpec((1, TN), lambda i, j, k: (0, j)),
                ],
                out_specs=pl.BlockSpec((TM, TN), lambda i, j, k: (i, j)),
                scratch_shapes=[pltpu.VMEM((TM, TN), jnp.float32)],
            ),
            compiler_params=pltpu.CompilerParams(
                dimension_semantics=("parallel", "parallel", "arbitrary"),
                vmem_limit_bytes=vmem_limit,
            ),
        )(x_p, params["w"], params["scale"], params["shift"])

    if (M_pad, N_pad) != (M, N):
        out = out[:M, :N]
    return out


def linear_block_forward(x, weight, bias, gamma, beta, running_mean, running_var,
                         *, eps=EPS, **tile_kwargs):
    """Convenience one-shot API. For repeated calls, hoist the prepare step."""
    params = prepare_linear_block_params(weight, bias, gamma, beta,
                                         running_mean, running_var, eps=eps)
    return linear_block_apply(x, params, **tile_kwargs)


def linear_block_reference(x, weight, bias, gamma, beta, running_mean,
                           running_var, eps=EPS):
    """Pure-JAX reference mirroring the PyTorch eval-mode forward."""
    z = x @ weight.T + bias[None, :]
    # Dropout(0.2): identity in eval mode.
    z = (z - running_mean[None, :]) * lax.rsqrt(running_var[None, :] + eps)
    z = z * gamma[None, :] + beta[None, :]
    return jnp.maximum(z, 0.0)


if __name__ == "__main__":
    def _run_case(key, B, IN_C, OUT_C, **tile_kwargs):
        kx, kw, kb, kg, kbe, km, kv = jax.random.split(key, 7)
        x = jax.random.normal(kx, (B, IN_C), dtype=jnp.float32)
        weight = jax.random.normal(kw, (OUT_C, IN_C), dtype=jnp.float32) * 0.1
        bias = jax.random.normal(kb, (OUT_C,), dtype=jnp.float32) * 0.1
        gamma = 1.0 + 0.1 * jax.random.normal(kg, (OUT_C,), dtype=jnp.float32)
        beta = 0.1 * jax.random.normal(kbe, (OUT_C,), dtype=jnp.float32)
        running_mean = 0.1 * jax.random.normal(km, (OUT_C,), dtype=jnp.float32)
        running_var = 1.0 + 0.2 * jax.random.uniform(kv, (OUT_C,), dtype=jnp.float32)

        params = prepare_linear_block_params(weight, bias, gamma, beta,
                                             running_mean, running_var)
        out = linear_block_apply(x, params, **tile_kwargs)
        jax.block_until_ready(out)

        ref = linear_block_reference(x, weight, bias, gamma, beta,
                                     running_mean, running_var)
        assert out.shape == (B, OUT_C)
        # bf16 matmul operands (f32 accumulation) -> relaxed tolerance vs f32 ref.
        assert jnp.allclose(out, ref, atol=2e-2, rtol=2e-2), "mismatch vs reference"

    key = jax.random.PRNGKey(0)
    k1, k2 = jax.random.split(key)

    # Case 1: small shapes, single-K (no reduction axis) kernel path.
    _run_case(k1, B=16, IN_C=32, OUT_C=48)

    # Case 2: forces the K-reduction kernel path (tiny tk / max_single_k) and
    # the megacore TN-capping heuristic, still at small shapes.
    _run_case(k2, B=16, IN_C=256, OUT_C=256, tk=128, max_single_k=128)

    print("KERNEL_OK")
</pallas_src>

<mosaic_0001>
module attributes {stable_mosaic.version = 11 : i64} {
  func.func @_linear_block_single_k_kernel(%arg0: i32, %arg1: i32, %arg2: memref<16x128xbf16, #tpu.memory_space<vmem>>, %arg3: memref<128x128xbf16, #tpu.memory_space<vmem>>, %arg4: memref<1x128xf32, #tpu.memory_space<vmem>>, %arg5: memref<1x128xf32, #tpu.memory_space<vmem>>, %arg6: memref<16x128xf32, #tpu.memory_space<vmem>>) attributes {dimension_semantics = [#tpu.dimension_semantics<parallel>, #tpu.dimension_semantics<parallel>], iteration_bounds = array<i64: 1, 1>, scalar_prefetch = 0 : i64, scratch_operands = 0 : i64, tpu.core_type = #tpu.core_type<tc>, window_params = [{transform_indices = @transform_0, window_bounds = array<i64: 16, 128>}, {transform_indices = @transform_1, window_bounds = array<i64: 128, 128>}, {transform_indices = @transform_2, window_bounds = array<i64: 1, 128>}, {transform_indices = @transform_3, window_bounds = array<i64: 1, 128>}, {transform_indices = @transform_4, window_bounds = array<i64: 16, 128>}]} {
    %c0 = arith.constant 0 : index
    %c0_0 = arith.constant 0 : index
    %0 = vector.load %arg2[%c0, %c0_0] : memref<16x128xbf16, #tpu.memory_space<vmem>>, vector<16x128xbf16>
    %c0_1 = arith.constant 0 : index
    %c0_2 = arith.constant 0 : index
    %1 = vector.load %arg3[%c0_1, %c0_2] : memref<128x128xbf16, #tpu.memory_space<vmem>>, vector<128x128xbf16>
    %cst = arith.constant dense<0.000000e+00> : vector<16x128xf32>
    %2 = tpu.matmul %0, %1, %cst {dimension_numbers = #tpu.dot_dimension_numbers<[1], [0], [0], [1], [0, 0, 1, 1], [], []>} : vector<16x128xbf16>, vector<128x128xbf16>, vector<16x128xf32> -> vector<16x128xf32>
    %c0_3 = arith.constant 0 : index
    %c0_4 = arith.constant 0 : index
    %3 = vector.load %arg4[%c0_3, %c0_4] : memref<1x128xf32, #tpu.memory_space<vmem>>, vector<1x128xf32>
    %4 = vector.broadcast %3 : vector<1x128xf32> to vector<16x128xf32>
    %5 = arith.mulf %2, %4 : vector<16x128xf32>
    %c0_5 = arith.constant 0 : index
    %c0_6 = arith.constant 0 : index
    %6 = vector.load %arg5[%c0_5, %c0_6] : memref<1x128xf32, #tpu.memory_space<vmem>>, vector<1x128xf32>
    %7 = vector.broadcast %6 : vector<1x128xf32> to vector<16x128xf32>
    %8 = arith.addf %5, %7 : vector<16x128xf32>
    %cst_7 = arith.constant 0.000000e+00 : f32
    %9 = vector.broadcast %cst_7 : f32 to vector<16x128xf32>
    %10 = arith.maximumf %8, %9 : vector<16x128xf32>
    %c0_8 = arith.constant 0 : index
    %c0_9 = arith.constant 0 : index
    %11 = vector.load %arg6[%c0_8, %c0_9] : memref<16x128xf32, #tpu.memory_space<vmem>>, vector<16x128xf32>
    tpu.vector_store %arg6[%c0_8, %c0_9], %10 {strides = array<i32>} : memref<16x128xf32, #tpu.memory_space<vmem>>, vector<16x128xf32>,
    return
  }
  func.func @transform_0(%arg0: i32, %arg1: i32) -> (i32, i32) {
    %c0_i32 = arith.constant 0 : i32
    %c0_i32_0 = arith.constant 0 : i32
    return %arg0, %c0_i32 : i32, i32
  }
  func.func @transform_1(%arg0: i32, %arg1: i32) -> (i32, i32) {
    %c0_i32 = arith.constant 0 : i32
    %c0_i32_0 = arith.constant 0 : i32
    return %c0_i32, %arg1 : i32, i32
  }
  func.func @transform_2(%arg0: i32, %arg1: i32) -> (i32, i32) {
    %c0_i32 = arith.constant 0 : i32
    %c0_i32_0 = arith.constant 0 : i32
    return %c0_i32, %arg1 : i32, i32
  }
  func.func @transform_3(%arg0: i32, %arg1: i32) -> (i32, i32) {
    %c0_i32 = arith.constant 0 : i32
    %c0_i32_0 = arith.constant 0 : i32
    return %c0_i32, %arg1 : i32, i32
  }
  func.func @transform_4(%arg0: i32, %arg1: i32) -> (i32, i32) {
    %c0_i32 = arith.constant 0 : i32
    return %arg0, %arg1 : i32, i32
  }
}

</mosaic_0001>

<llo_original>
// kernel: tpu_custom_call.1
$region0: #{tpu_custom_call.1}
  #allocation0 [shape = 'u32[]', space=smem, size = 0x4, offset = 0x4, fixed_abs, tag = 'smem constant byte address 0x4 - core index']
  #allocation1 [shape = 'u32[144,128]{1,0:T(1,128)}', space=vmem, size = 0x12000, scoped, tag = 'internal scratch']
  %s0 = inlined_call_operand.hbm [shape: bf16[16,128], index: 0, kind: input, shape index: {}]
  %s1 = inlined_call_operand.hbm [shape: bf16[128,128], index: 1, kind: input, shape index: {}]
  %s2 = inlined_call_operand.vmem [shape: f32[1,128], index: 2, kind: input, shape index: {}]
  %s3 = inlined_call_operand.vmem [shape: f32[1,128], index: 3, kind: input, shape index: {}]
  %s4 = inlined_call_operand.hbm [shape: f32[16,128], index: 4, kind: output, shape index: {}]
  %s5 = sld [smem:[#allocation0]]
  $region34: #{tpu_custom_call.1} parent=0
    _
  %s7 = ssub.s32 1, %s5
  %s8 = scalar_select 0, %s7, %s5
  $region1: #{tpu_custom_call.1} parent=0
    #allocation2 [shape = 'u8[4096]{0}', space=vmem, size = 0x1000, scoped, tag = 'input window, operand 0, single buffered']
    #allocation3 [shape = 's32[1]{0}', space=sflag, size = 0x4, scoped, tag = 'scoped memory for tpu_custom_call.1']
    #allocation4 [shape = 's32[1]{0}', space=sflag, size = 0x4, scoped, tag = 'scoped memory for tpu_custom_call.1']
    #allocation5 [shape = 'u8[32768]{0}', space=vmem, size = 0x8000, scoped, tag = 'input window, operand 1, single buffered']
    #allocation6 [shape = 's32[1]{0}', space=sflag, size = 0x4, scoped, tag = 'scoped memory for tpu_custom_call.1']
    #allocation7 [shape = 'u8[8192]{0}', space=vmem, size = 0x2000, scoped, tag = 'output window, operand 0, single buffered']
    %9 = vsyncpa [#allocation3], 0
    %10 = vsyncpa [#allocation6], 0
    %11 = vsyncpa [#allocation4], 0
    // Predicated region
    $region2: #{tpu_custom_call.1} parent=1 // pred_check
      _
    $region3: #{tpu_custom_call.1} parent=1 // pred_check_branch
      %13 = sbr.rel (0) target = $region5
    $region4: #{tpu_custom_call.1} parent=1 // pred_region
      %s15 = ssub.s32 128, 128
      %16 = vsyncadd [#allocation3], %s15
      %s17 = sshll.u32 [#allocation2], 4
      %s18 = int_to_ptr.vmem [resolvable:$true] %s17
      %23 = dma.hbm_to_vmem [thread:$0]  %s0, 128, %s18, [#allocation3], 64, 64, 4
    $region5: #{tpu_custom_call.1} parent=1 // pred_fallthru
      _
    // Predicated region
    $region6: #{tpu_custom_call.1} parent=1 // pred_check
      _
    $region7: #{tpu_custom_call.1} parent=1 // pred_check_branch
      %25 = sbr.rel (0) target = $region9
    $region8: #{tpu_custom_call.1} parent=1 // pred_region
      %s27 = ssub.s32 1024, 1024
      %28 = vsyncadd [#allocation6], %s27
      %s29 = sshll.u32 [#allocation5], 4
      %s30 = int_to_ptr.vmem [resolvable:$true] %s29
      %35 = dma.hbm_to_vmem [thread:$0]  %s1, 1024, %s30, [#allocation6], 64, 64, 4
    $region9: #{tpu_custom_call.1} parent=1 // pred_fallthru
      _
    // Predicated region
    $region10: #{tpu_custom_call.1} parent=1 // pred_check
      _
    $region11: #{tpu_custom_call.1} parent=1 // pred_check_branch
      %37 = sbr.rel (0) target = $region13
    $region12: #{tpu_custom_call.1} parent=1 // pred_region
      _
    $region13: #{tpu_custom_call.1} parent=1 // pred_fallthru
      _
    // Predicated region
    $region14: #{tpu_custom_call.1} parent=1 // pred_check
      _
    $region15: #{tpu_custom_call.1} parent=1 // pred_check_branch
      %39 = sbr.rel (0) target = $region17
    $region16: #{tpu_custom_call.1} parent=1 // pred_region
      _
    $region17: #{tpu_custom_call.1} parent=1 // pred_fallthru
      _
    // Predicated region
    $region18: #{tpu_custom_call.1} parent=1 // pred_check
      _
    $region19: #{tpu_custom_call.1} parent=1 // pred_check_branch
      %41 = sbr.rel (0) target = $region21
    $region20: #{tpu_custom_call.1} parent=1 // pred_region
      %42 = dma.done [#allocation3], 128
    $region21: #{tpu_custom_call.1} parent=1 // pred_fallthru
      _
    // Predicated region
    $region22: #{tpu_custom_call.1} parent=1 // pred_check
      _
    $region23: #{tpu_custom_call.1} parent=1 // pred_check_branch
      %44 = sbr.rel (0) target = $region25
    $region24: #{tpu_custom_call.1} parent=1 // pred_region
      %45 = dma.done [#allocation6], 1024
    $region25: #{tpu_custom_call.1} parent=1 // pred_fallthru
      _
    %v47 = vld [vmem:[#allocation2] sm:$0xf]
    %v48 = vld [vmem:[#allocation2 + $0x4] sm:$0xf]
    %v49 = vld [vmem:[#allocation5] sm:$0xf]
    %v50 = vld [vmem:[#allocation5 + $0x4] sm:$0xf]
    %v51 = vld [vmem:[#allocation5 + $0x8] sm:$0xf]
    %v52 = vld [vmem:[#allocation5 + $0xc] sm:$0xf]
    %v53 = vld [vmem:[#allocation5 + $0x10] sm:$0xf]
    %v54 = vld [vmem:[#allocation5 + $0x14] sm:$0xf]
    %v55 = vld [vmem:[#allocation5 + $0x18] sm:$0xf]
    %v56 = vld [vmem:[#allocation5 + $0x1c] sm:$0xf]
    %v57 = vld [vmem:[#allocation5 + $0x20] sm:$0xf]
    %v58 = vld [vmem:[#allocation5 + $0x24] sm:$0xf]
    %v59 = vld [vmem:[#allocation5 + $0x28] sm:$0xf]
    %v60 = vld [vmem:[#allocation5 + $0x2c] sm:$0xf]
    %v61 = vld [vmem:[#allocation5 + $0x30] sm:$0xf]
    %v62 = vld [vmem:[#allocation5 + $0x34] sm:$0xf]
    %v63 = vld [vmem:[#allocation5 + $0x38] sm:$0xf]
    %v64 = vld [vmem:[#allocation5 + $0x3c] sm:$0xf]
    %v67 = vunpack.c.l.b16 %v47
    %v68 = vunpack.c.l.b16 %v48
    %v69 = vpack.c.b16 %v68, %v67
    %v87 = vunpack.c.l.b16 %v49
    %v88 = vunpack.c.l.b16 %v50
    %v89 = vunpack.c.l.b16 %v51
    %v90 = vunpack.c.l.b16 %v52
    %v91 = vunpack.c.l.b16 %v53
    %v92 = vunpack.c.l.b16 %v54
    %v93 = vunpack.c.l.b16 %v55
    %v94 = vunpack.c.l.b16 %v56
    %v95 = vunpack.c.l.b16 %v57
    %v96 = vunpack.c.l.b16 %v58
    %v97 = vunpack.c.l.b16 %v59
    %v98 = vunpack.c.l.b16 %v60
    %v99 = vunpack.c.l.b16 %v61
    %v100 = vunpack.c.l.b16 %v62
    %v101 = vunpack.c.l.b16 %v63
    %v102 = vunpack.c.l.b16 %v64
    %v103 = vpack.c.b16 %v88, %v87
    %v104 = vpack.c.b16 %v90, %v89
    %v105 = vpack.c.b16 %v92, %v91
    %v106 = vpack.c.b16 %v94, %v93
    %v107 = vpack.c.b16 %v96, %v95
    %v108 = vpack.c.b16 %v98, %v97
    %v109 = vpack.c.b16 %v100, %v99
    %v110 = vpack.c.b16 %v102, %v101
    %119 = vmatprep.subr.bf16.mxu0 0
    %120 = vmatpush1.bf16.msra.mxu0 %v103
    %121 = vmatprep.subr.bf16.mxu0 0
    %122 = vmatpush1.bf16.msra.mxu0 %v104
    %123 = vmatprep.subr.bf16.mxu0 0
    %124 = vmatpush1.bf16.msra.mxu0 %v105
    %125 = vmatprep.subr.bf16.mxu0 0
    %126 = vmatpush1.bf16.msra.mxu0 %v106
    %127 = vmatprep.subr.bf16.mxu0 0
    %128 = vmatpush1.bf16.msra.mxu0 %v107
    %129 = vmatprep.subr.bf16.mxu0 0
    %130 = vmatpush1.bf16.msra.mxu0 %v108
    %131 = vmatprep.subr.bf16.mxu0 0
    %132 = vmatpush1.bf16.msra.mxu0 %v109
    %133 = vmatprep.subr.bf16.mxu0 0
    %134 = vmatpush1.bf16.msra.mxu0 %v110
    %135 = vmatprep.subr.bf16.mxu0 0
    %136 = vmatpush1.bf16.msra.mxu0 0
    %137 = vmatprep.subr.bf16.mxu0 0
    %138 = vmatpush1.bf16.msra.mxu0 0
    %139 = vmatprep.subr.bf16.mxu0 0
    %140 = vmatpush1.bf16.msra.mxu0 0
    %141 = vmatprep.subr.bf16.mxu0 0
    %142 = vmatpush1.bf16.msra.mxu0 0
    %143 = vmatprep.subr.bf16.mxu0 0
    %144 = vmatpush1.bf16.msra.mxu0 0
    %145 = vmatprep.subr.bf16.mxu0 0
    %146 = vmatpush1.bf16.msra.mxu0 0
    %147 = vmatprep.subr.bf16.mxu0 0
    %148 = vmatpush1.bf16.msra.mxu0 0
    %149 = vmatprep.subr.bf16.mxu0 0
    %150 = vmatpush1.bf16.msra.mxu0 0
    %151 = vmatprep.mubr.bf16.mxu0 0
    %152 = vmatmul.mubr.bf16.gmra.mrb[0].mxu0 %v69
    %v153 = vpop.f32.mrb[0].mxu0
    %v154 = vadd.f32 0.0, %v153
    %v155 = vpop.f32.mrb[0].mxu0
    %v156 = vpop.f32.mrb[0].mxu0
    %v157 = vadd.f32 0.0, %v156
    %v158 = vpop.f32.mrb[0].mxu0
    %159 = vdwg.mxu0
    %v160 = vld [vmem:[%s2] sm:$0x1]
    %v162 = vlaneseq
    %v163 = vshrl.u32 %v162, 7
    %v164 = vsub.s32 0, %v163
    %v165 = vrot.slane %v160, %v164
    %v167 = vmul.f32 %v154, %v165
    %v168 = vmul.f32 %v157, %v165
    %v169 = vld [vmem:[%s3] sm:$0x1]
    %v171 = vlaneseq
    %v172 = vshrl.u32 %v171, 7
    %v173 = vsub.s32 0, %v172
    %v174 = vrot.slane %v169, %v173
    %v176 = vadd.f32 %v167, %v174
    %v177 = vadd.f32 %v168, %v174
    %v178 = vmax.f32 %v176, 0.0
    %v179 = vmax.f32 %v177, 0.0
    %180 = vst [vmem:[#allocation7] sm:$0xff] %v178
    %181 = vst [vmem:[#allocation7 + $0x8] sm:$0xff] %v179
    // Predicated region
    $region26: #{tpu_custom_call.1} parent=1 // pred_check
      _
    $region27: #{tpu_custom_call.1} parent=1 // pred_check_branch
      %183 = sbr.rel (0) target = $region29
    $region28: #{tpu_custom_call.1} parent=1 // pred_region
      %s185 = ssub.s32 256, 256
      %186 = vsyncadd [#allocation4], %s185
      %s187 = sshll.u32 [#allocation7], 4
      %s188 = int_to_ptr.vmem [resolvable:$true] %s187
      %193 = dma.vmem_to_hbm [thread:$0]  %s188, 256, %s4, [#allocation4], 128, 128, 8
    $region29: #{tpu_custom_call.1} parent=1 // pred_fallthru
      _
    // Predicated region
    $region30: #{tpu_custom_call.1} parent=1 // pred_check
      _
    $region31: #{tpu_custom_call.1} parent=1 // pred_check_branch
      %195 = sbr.rel (0) target = $region33
    $region32: #{tpu_custom_call.1} parent=1 // pred_region
      %196 = dma.done [#allocation4], 256
    $region33: #{tpu_custom_call.1} parent=1 // pred_fallthru
      _
    %197 = vsyncpa [#allocation3], 1
    %198 = vsyncpa [#allocation6], 1
    %199 = vsyncpa [#allocation4], 1

</llo_original>
